<compile_context>
chip_gen: v5e
topology: v5e:2x2
jax: 0.10.0
libtpu: 0.0.40
codegen_flags: <defaults>
</compile_context>

<pallas_src>
import jax
import jax.numpy as jnp
from jax.experimental import pallas as pl
from jax.experimental.pallas import tpu as pltpu

EPS = 1e-5


def _round_up(n, m):
    return ((n + m - 1) // m) * m


def ffn_kernel(x_ref, keep_ref, w1_ref, b1_ref, w2_ref, b2_ref, g_ref, beta_ref, o_ref):
    x = x_ref[...]                                                        # (TM, D), input dtype
    # MXU matmul 1 (f32 accumulation) + bias + ReLU
    h = jnp.dot(x, w1_ref[...], preferred_element_type=jnp.float32) + b1_ref[...]
    h = jnp.maximum(h, 0.0)
    # MXU matmul 2 — cast the activation back to the weight dtype so bf16 weights use the
    # bf16 MXU path; f32 weights make this a no-op.
    y = jnp.dot(h.astype(w2_ref.dtype), w2_ref[...],
                preferred_element_type=jnp.float32) + b2_ref[...]
    # TODO(synk): nn.Dropout is stochastic; treated as identity (inference mode only).
    z = y + x.astype(jnp.float32)                                         # residual, f32
    # LayerNorm over d_model: one-pass variance, gamma folded into the rsqrt scale.
    mu = jnp.mean(z, axis=-1, keepdims=True)
    var = jnp.mean(z * z, axis=-1, keepdims=True) - mu * mu
    inv = jax.lax.rsqrt(var + EPS)
    out = (z - mu) * (g_ref[...] * inv) + beta_ref[...]
    # masked_fill(pad_mask, 0.0) == multiply by a per-row float keep-mask (TM, 1).
    o_ref[...] = (out * keep_ref[...]).astype(o_ref.dtype)


def positionwise_layer(x, pad_mask, w1, b1, w2, b2, gamma, beta, *, tile_m=512):
    """x: (B, S, D); pad_mask: bool, broadcastable to (B, S, 1) (True == padding position).

    Weights stored as right-multiply matrices: W1:(D, d_inner), W2:(d_inner, D)
    (i.e. transpose of the Conv1d/Linear weight). Dropout is identity (inference).
    """
    assert tile_m % 8 == 0, "tile_m must be sublane-aligned (multiple of 8)"
    B, S, D = x.shape
    DI = w1.shape[1]
    rows = B * S

    x2 = x.reshape(rows, D)
    # Per-row float keep-mask: 1.0 for real tokens, 0.0 for padding. Only 1 scalar per row.
    keep = 1.0 - jnp.broadcast_to(pad_mask, (B, S, 1)).reshape(rows, 1).astype(jnp.float32)

    # Effective row tile: as large as requested, sublane-aligned, never larger than the data.
    tm = min(tile_m, _round_up(rows, 8))
    padded_rows = _round_up(rows, tm)
    if padded_rows != rows:
        pad = padded_rows - rows
        x2 = jnp.pad(x2, ((0, pad), (0, 0)))
        keep = jnp.pad(keep, ((0, pad), (0, 0)))          # padded rows are zeroed + sliced off

    out = pl.pallas_call(
        ffn_kernel,
        out_shape=jax.ShapeDtypeStruct((padded_rows, D), x.dtype),
        grid_spec=pltpu.PrefetchScalarGridSpec(
            num_scalar_prefetch=0,
            grid=(padded_rows // tm,),
            in_specs=[
                pl.BlockSpec((tm, D), lambda i: (i, 0)),   # x rows (streamed)
                pl.BlockSpec((tm, 1), lambda i: (i, 0)),   # per-row keep mask (streamed)
                pl.BlockSpec((D, DI), lambda i: (0, 0)),   # W1 (resident)
                pl.BlockSpec((1, DI), lambda i: (0, 0)),   # b1 (resident)
                pl.BlockSpec((DI, D), lambda i: (0, 0)),   # W2 (resident)
                pl.BlockSpec((1, D), lambda i: (0, 0)),    # b2 (resident)
                pl.BlockSpec((1, D), lambda i: (0, 0)),    # gamma (resident)
                pl.BlockSpec((1, D), lambda i: (0, 0)),    # beta (resident)
            ],
            out_specs=pl.BlockSpec((tm, D), lambda i: (i, 0)),
        ),
        compiler_params=pltpu.CompilerParams(
            dimension_semantics=("parallel",),             # megacore: shard row tiles across TCs
            vmem_limit_bytes=64 * 1024 * 1024,             # headroom for large tiles; fits v7x
        ),
    )(x2, keep, w1, b1.reshape(1, DI), w2, b2.reshape(1, D),
      gamma.reshape(1, D), beta.reshape(1, D))
    return out[:rows].reshape(B, S, D)


def reference(x, pad_mask, w1, b1, w2, b2, gamma, beta):
    h = jnp.maximum(x @ w1 + b1, 0.0)
    y = h @ w2 + b2
    z = y + x
    mu = jnp.mean(z, axis=-1, keepdims=True)
    var = jnp.mean((z - mu) ** 2, axis=-1, keepdims=True)
    out = (z - mu) / jnp.sqrt(var + EPS) * gamma + beta
    return jnp.where(jnp.broadcast_to(pad_mask, out.shape), 0.0, out)


if __name__ == "__main__":
    # Small shapes consistent with PositionwiseFeedForward(d_model=32, d_inner=64).
    # S=10 deliberately makes B*S not a multiple of 8 to exercise the padding path.
    B, S, D, DI = 2, 10, 32, 64
    key = jax.random.PRNGKey(0)
    kx, k1, kb1, k2, kb2, kg, kb, km = jax.random.split(key, 8)

    x = jax.random.normal(kx, (B, S, D), dtype=jnp.float32)
    w1 = jax.random.normal(k1, (D, DI), dtype=jnp.float32) * 0.1   # = Conv1d(D, DI, 1).weight[:, :, 0].T
    b1 = jax.random.normal(kb1, (DI,), dtype=jnp.float32) * 0.1
    w2 = jax.random.normal(k2, (DI, D), dtype=jnp.float32) * 0.1   # = Conv1d(DI, D, 1).weight[:, :, 0].T
    b2 = jax.random.normal(kb2, (D,), dtype=jnp.float32) * 0.1
    gamma = 1.0 + 0.05 * jax.random.normal(kg, (D,), dtype=jnp.float32)
    beta = 0.05 * jax.random.normal(kb, (D,), dtype=jnp.float32)
    # pad_mask: True where the position is padding (broadcast over d_model)
    pad_mask = jax.random.bernoulli(km, 0.25, (B, S, 1))

    out = positionwise_layer(x, pad_mask, w1, b1, w2, b2, gamma, beta)
    out = jax.block_until_ready(out)

    ref = reference(x, pad_mask, w1, b1, w2, b2, gamma, beta)
    assert out.shape == (B, S, D)
    assert jnp.allclose(out, ref, atol=1e-5, rtol=1e-5), "mismatch vs JAX reference"
    print("KERNEL_OK")
</pallas_src>

<mosaic_0001>
module attributes {stable_mosaic.version = 11 : i64} {
  func.func @ffn_kernel(%arg0: i32, %arg1: memref<24x32xf32, #tpu.memory_space<vmem>>, %arg2: memref<24x1xf32, #tpu.memory_space<vmem>>, %arg3: memref<32x64xf32, #tpu.memory_space<vmem>>, %arg4: memref<1x64xf32, #tpu.memory_space<vmem>>, %arg5: memref<64x32xf32, #tpu.memory_space<vmem>>, %arg6: memref<1x32xf32, #tpu.memory_space<vmem>>, %arg7: memref<1x32xf32, #tpu.memory_space<vmem>>, %arg8: memref<1x32xf32, #tpu.memory_space<vmem>>, %arg9: memref<24x32xf32, #tpu.memory_space<vmem>>) attributes {dimension_semantics = [#tpu.dimension_semantics<parallel>], iteration_bounds = array<i64: 1>, scalar_prefetch = 0 : i64, scratch_operands = 0 : i64, tpu.core_type = #tpu.core_type<tc>, window_params = [{transform_indices = @transform_0, window_bounds = array<i64: 24, 32>}, {transform_indices = @transform_1, window_bounds = array<i64: 24, 1>}, {pipeline_mode = #tpu.pipeline_mode<synchronous>, transform_indices = @transform_2, window_bounds = array<i64: 32, 64>}, {pipeline_mode = #tpu.pipeline_mode<synchronous>, transform_indices = @transform_3, window_bounds = array<i64: 1, 64>}, {pipeline_mode = #tpu.pipeline_mode<synchronous>, transform_indices = @transform_4, window_bounds = array<i64: 64, 32>}, {pipeline_mode = #tpu.pipeline_mode<synchronous>, transform_indices = @transform_5, window_bounds = array<i64: 1, 32>}, {pipeline_mode = #tpu.pipeline_mode<synchronous>, transform_indices = @transform_6, window_bounds = array<i64: 1, 32>}, {pipeline_mode = #tpu.pipeline_mode<synchronous>, transform_indices = @transform_7, window_bounds = array<i64: 1, 32>}, {transform_indices = @transform_8, window_bounds = array<i64: 24, 32>}]} {
    %c0 = arith.constant 0 : index
    %c0_0 = arith.constant 0 : index
    %0 = vector.load %arg1[%c0, %c0_0] : memref<24x32xf32, #tpu.memory_space<vmem>>, vector<24x32xf32>
    %c0_1 = arith.constant 0 : index
    %c0_2 = arith.constant 0 : index
    %1 = vector.load %arg3[%c0_1, %c0_2] : memref<32x64xf32, #tpu.memory_space<vmem>>, vector<32x64xf32>
    %cst = arith.constant dense<0.000000e+00> : vector<24x64xf32>
    %2 = tpu.matmul %0, %1, %cst {dimension_numbers = #tpu.dot_dimension_numbers<[1], [0], [0], [1], [0, 0, 1, 1], [], []>} : vector<24x32xf32>, vector<32x64xf32>, vector<24x64xf32> -> vector<24x64xf32>
    %c0_3 = arith.constant 0 : index
    %c0_4 = arith.constant 0 : index
    %3 = vector.load %arg4[%c0_3, %c0_4] : memref<1x64xf32, #tpu.memory_space<vmem>>, vector<1x64xf32>
    %4 = vector.broadcast %3 : vector<1x64xf32> to vector<24x64xf32>
    %5 = arith.addf %2, %4 : vector<24x64xf32>
    %cst_5 = arith.constant 0.000000e+00 : f32
    %6 = vector.broadcast %cst_5 : f32 to vector<24x64xf32>
    %7 = arith.maximumf %5, %6 : vector<24x64xf32>
    %c0_6 = arith.constant 0 : index
    %c0_7 = arith.constant 0 : index
    %8 = vector.load %arg5[%c0_6, %c0_7] : memref<64x32xf32, #tpu.memory_space<vmem>>, vector<64x32xf32>
    %cst_8 = arith.constant dense<0.000000e+00> : vector<24x32xf32>
    %9 = tpu.matmul %7, %8, %cst_8 {dimension_numbers = #tpu.dot_dimension_numbers<[1], [0], [0], [1], [0, 0, 1, 1], [], []>} : vector<24x64xf32>, vector<64x32xf32>, vector<24x32xf32> -> vector<24x32xf32>
    %c0_9 = arith.constant 0 : index
    %c0_10 = arith.constant 0 : index
    %10 = vector.load %arg6[%c0_9, %c0_10] : memref<1x32xf32, #tpu.memory_space<vmem>>, vector<1x32xf32>
    %11 = vector.broadcast %10 : vector<1x32xf32> to vector<24x32xf32>
    %12 = arith.addf %9, %11 : vector<24x32xf32>
    %13 = arith.addf %12, %0 : vector<24x32xf32>
    %cst_11 = arith.constant dense<0.000000e+00> : vector<24xf32>
    %14 = vector.multi_reduction <add>, %13, %cst_11 [1] : vector<24x32xf32> to vector<24xf32>
    %15 = vector.shape_cast %14 : vector<24xf32> to vector<24x1xf32>
    %cst_12 = arith.constant 3.200000e+01 : f32
    %16 = vector.broadcast %cst_12 : f32 to vector<24x1xf32>
    %17 = arith.divf %15, %16 : vector<24x1xf32>
    %18 = arith.mulf %13, %13 : vector<24x32xf32>
    %cst_13 = arith.constant dense<0.000000e+00> : vector<24xf32>
    %19 = vector.multi_reduction <add>, %18, %cst_13 [1] : vector<24x32xf32> to vector<24xf32>
    %20 = vector.shape_cast %19 : vector<24xf32> to vector<24x1xf32>
    %cst_14 = arith.constant 3.200000e+01 : f32
    %21 = vector.broadcast %cst_14 : f32 to vector<24x1xf32>
    %22 = arith.divf %20, %21 : vector<24x1xf32>
    %23 = arith.mulf %17, %17 : vector<24x1xf32>
    %24 = arith.subf %22, %23 : vector<24x1xf32>
    %cst_15 = arith.constant 9.99999974E-6 : f32
    %25 = vector.broadcast %cst_15 : f32 to vector<24x1xf32>
    %26 = arith.addf %24, %25 : vector<24x1xf32>
    %27 = math.rsqrt %26 : vector<24x1xf32>
    %28 = vector.broadcast %17 : vector<24x1xf32> to vector<24x32xf32>
    %29 = arith.subf %13, %28 : vector<24x32xf32>
    %c0_16 = arith.constant 0 : index
    %c0_17 = arith.constant 0 : index
    %30 = vector.load %arg7[%c0_16, %c0_17] : memref<1x32xf32, #tpu.memory_space<vmem>>, vector<1x32xf32>
    %31 = vector.broadcast %30 : vector<1x32xf32> to vector<24x32xf32>
    %32 = vector.broadcast %27 : vector<24x1xf32> to vector<24x32xf32>
    %33 = arith.mulf %31, %32 : vector<24x32xf32>
    %34 = arith.mulf %29, %33 : vector<24x32xf32>
    %c0_18 = arith.constant 0 : index
    %c0_19 = arith.constant 0 : index
    %35 = vector.load %arg8[%c0_18, %c0_19] : memref<1x32xf32, #tpu.memory_space<vmem>>, vector<1x32xf32>
    %36 = vector.broadcast %35 : vector<1x32xf32> to vector<24x32xf32>
    %37 = arith.addf %34, %36 : vector<24x32xf32>
    %c0_20 = arith.constant 0 : index
    %c0_21 = arith.constant 0 : index
    %38 = vector.load %arg2[%c0_20, %c0_21] : memref<24x1xf32, #tpu.memory_space<vmem>>, vector<24x1xf32>
    %39 = vector.broadcast %38 : vector<24x1xf32> to vector<24x32xf32>
    %40 = arith.mulf %37, %39 : vector<24x32xf32>
    %c0_22 = arith.constant 0 : index
    %c0_23 = arith.constant 0 : index
    %41 = vector.load %arg9[%c0_22, %c0_23] : memref<24x32xf32, #tpu.memory_space<vmem>>, vector<24x32xf32>
    tpu.vector_store %arg9[%c0_22, %c0_23], %40 {strides = array<i32>} : memref<24x32xf32, #tpu.memory_space<vmem>>, vector<24x32xf32>,
    return
  }
  func.func @transform_0(%arg0: i32) -> (i32, i32) {
    %c0_i32 = arith.constant 0 : i32
    %c0_i32_0 = arith.constant 0 : i32
    return %arg0, %c0_i32 : i32, i32
  }
  func.func @transform_1(%arg0: i32) -> (i32, i32) {
    %c0_i32 = arith.constant 0 : i32
    %c0_i32_0 = arith.constant 0 : i32
    return %arg0, %c0_i32 : i32, i32
  }
  func.func @transform_2(%arg0: i32) -> (i32, i32) {
    %c0_i32 = arith.constant 0 : i32
    %c0_i32_0 = arith.constant 0 : i32
    %c0_i32_1 = arith.constant 0 : i32
    return %c0_i32, %c0_i32_0 : i32, i32
  }
  func.func @transform_3(%arg0: i32) -> (i32, i32) {
    %c0_i32 = arith.constant 0 : i32
    %c0_i32_0 = arith.constant 0 : i32
    %c0_i32_1 = arith.constant 0 : i32
    return %c0_i32, %c0_i32_0 : i32, i32
  }
  func.func @transform_4(%arg0: i32) -> (i32, i32) {
    %c0_i32 = arith.constant 0 : i32
    %c0_i32_0 = arith.constant 0 : i32
    %c0_i32_1 = arith.constant 0 : i32
    return %c0_i32, %c0_i32_0 : i32, i32
  }
  func.func @transform_5(%arg0: i32) -> (i32, i32) {
    %c0_i32 = arith.constant 0 : i32
    %c0_i32_0 = arith.constant 0 : i32
    %c0_i32_1 = arith.constant 0 : i32
    return %c0_i32, %c0_i32_0 : i32, i32
  }
  func.func @transform_6(%arg0: i32) -> (i32, i32) {
    %c0_i32 = arith.constant 0 : i32
    %c0_i32_0 = arith.constant 0 : i32
    %c0_i32_1 = arith.constant 0 : i32
    return %c0_i32, %c0_i32_0 : i32, i32
  }
  func.func @transform_7(%arg0: i32) -> (i32, i32) {
    %c0_i32 = arith.constant 0 : i32
    %c0_i32_0 = arith.constant 0 : i32
    %c0_i32_1 = arith.constant 0 : i32
    return %c0_i32, %c0_i32_0 : i32, i32
  }
  func.func @transform_8(%arg0: i32) -> (i32, i32) {
    %c0_i32 = arith.constant 0 : i32
    %c0_i32_0 = arith.constant 0 : i32
    return %arg0, %c0_i32 : i32, i32
  }
}

</mosaic_0001>

<llo_original>
// kernel: tpu_custom_call.1
$region0: #{tpu_custom_call.1}
  #allocation0 [shape = 'u32[]', space=smem, size = 0x4, offset = 0x4, fixed_abs, tag = 'smem constant byte address 0x4 - core index']
  #allocation1 [shape = 'u32[72,128]{1,0:T(1,128)}', space=vmem, size = 0x9000, scoped, tag = 'internal scratch']
  %s0 = inlined_call_operand.vmem [shape: f32[24,32], index: 0, kind: input, shape index: {}]
  %s1 = inlined_call_operand.vmem [shape: f32[24,1], index: 1, kind: input, shape index: {}]
  %s2 = inlined_call_operand.vmem [shape: f32[32,64], index: 2, kind: input, shape index: {}]
  %s3 = inlined_call_operand.vmem [shape: f32[1,64], index: 3, kind: input, shape index: {}]
  %s4 = inlined_call_operand.vmem [shape: f32[64,32], index: 4, kind: input, shape index: {}]
  %s5 = inlined_call_operand.vmem [shape: f32[1,32], index: 5, kind: input, shape index: {}]
  %s6 = inlined_call_operand.vmem [shape: f32[1,32], index: 6, kind: input, shape index: {}]
  %s7 = inlined_call_operand.vmem [shape: f32[1,32], index: 7, kind: input, shape index: {}]
  %s8 = inlined_call_operand.hbm [shape: f32[24,32], index: 8, kind: output, shape index: {}]
  %s9 = sld [smem:[#allocation0]]
  $region42: #{tpu_custom_call.1} parent=0
    _
  %s11 = ssub.s32 1, %s9
  %s12 = scalar_select 0, %s11, %s9
  $region1: #{tpu_custom_call.1} parent=0
    #allocation2 [shape = 'u8[12288]{0}', space=vmem, size = 0x3000, scoped, tag = 'output window, operand 0, single buffered']
    #allocation3 [shape = 's32[1]{0}', space=sflag, size = 0x4, scoped, tag = 'scoped memory for tpu_custom_call.1']
    %13 = vsyncpa [#allocation3], 0
    // Predicated region
    $region2: #{tpu_custom_call.1} parent=1 // pred_check
      _
    $region3: #{tpu_custom_call.1} parent=1 // pred_check_branch
      %15 = sbr.rel (0) target = $region5
    $region4: #{tpu_custom_call.1} parent=1 // pred_region
      _
    $region5: #{tpu_custom_call.1} parent=1 // pred_fallthru
      _
    // Predicated region
    $region6: #{tpu_custom_call.1} parent=1 // pred_check
      _
    $region7: #{tpu_custom_call.1} parent=1 // pred_check_branch
      %17 = sbr.rel (0) target = $region9
    $region8: #{tpu_custom_call.1} parent=1 // pred_region
      _
    $region9: #{tpu_custom_call.1} parent=1 // pred_fallthru
      _
    // Predicated region
    $region10: #{tpu_custom_call.1} parent=1 // pred_check
      _
    $region11: #{tpu_custom_call.1} parent=1 // pred_check_branch
      %19 = sbr.rel (0) target = $region13
    $region12: #{tpu_custom_call.1} parent=1 // pred_region
      _
    $region13: #{tpu_custom_call.1} parent=1 // pred_fallthru
      _
    // Predicated region
    $region14: #{tpu_custom_call.1} parent=1 // pred_check
      _
    $region15: #{tpu_custom_call.1} parent=1 // pred_check_branch
      %21 = sbr.rel (0) target = $region17
    $region16: #{tpu_custom_call.1} parent=1 // pred_region
      _
    $region17: #{tpu_custom_call.1} parent=1 // pred_fallthru
      _
    // Predicated region
    $region18: #{tpu_custom_call.1} parent=1 // pred_check
      _
    $region19: #{tpu_custom_call.1} parent=1 // pred_check_branch
      %23 = sbr.rel (0) target = $region21
    $region20: #{tpu_custom_call.1} parent=1 // pred_region
      _
    $region21: #{tpu_custom_call.1} parent=1 // pred_fallthru
      _
    // Predicated region
    $region22: #{tpu_custom_call.1} parent=1 // pred_check
      _
    $region23: #{tpu_custom_call.1} parent=1 // pred_check_branch
      %25 = sbr.rel (0) target = $region25
    $region24: #{tpu_custom_call.1} parent=1 // pred_region
      _
    $region25: #{tpu_custom_call.1} parent=1 // pred_fallthru
      _
    // Predicated region
    $region26: #{tpu_custom_call.1} parent=1 // pred_check
      _
    $region27: #{tpu_custom_call.1} parent=1 // pred_check_branch
      %27 = sbr.rel (0) target = $region29
    $region28: #{tpu_custom_call.1} parent=1 // pred_region
      _
    $region29: #{tpu_custom_call.1} parent=1 // pred_fallthru
      _
    // Predicated region
    $region30: #{tpu_custom_call.1} parent=1 // pred_check
      _
    $region31: #{tpu_custom_call.1} parent=1 // pred_check_branch
      %29 = sbr.rel (0) target = $region33
    $region32: #{tpu_custom_call.1} parent=1 // pred_region
      _
    $region33: #{tpu_custom_call.1} parent=1 // pred_fallthru
      _
    %v30 = vld [vmem:[%s0] sm:$0xff]
    %v31 = vld [vmem:[%s0 + $0x8] sm:$0xff]
    %v32 = vld [vmem:[%s0 + $0x10] sm:$0xff]
    %v33 = vld [vmem:[%s2] sm:$0xff]
    %v34 = vld [vmem:[%s2 + $0x8] sm:$0xff]
    %v35 = vld [vmem:[%s2 + $0x10] sm:$0xff]
    %v36 = vld [vmem:[%s2 + $0x18] sm:$0xff]
    %v37 = vld [vmem:[%s3] sm:$0x1]
    %v39 = vperm.slane %v37, 0
    %vm41 = vcmask 261120
    %v43 = vsel %vm41, %v30, 0
    %v46 = vsel %vm41, %v31, 0
    %v49 = vsel %vm41, %v32, 0
    %51 = vmatpush.msra.mxu0 0.0
    %52 = vmatpush.msra.mxu0 0.0
    %53 = vmatpush.msra.mxu0 0.0
    %54 = vmatpush.msra.mxu0 0.0
    %55 = vmatpush.msra.mxu0 0.0
    %56 = vmatpush.msra.mxu0 0.0
    %57 = vmatpush.msra.mxu0 0.0
    %58 = vmatpush.msra.mxu0 0.0
    %59 = vmatpush.msra.mxu0 0.0
    %60 = vmatpush.msra.mxu0 0.0
    %61 = vmatpush.msra.mxu0 0.0
    %62 = vmatpush.msra.mxu0 0.0
    %63 = vmatpush.msra.mxu0 %v36
    %64 = vmatpush.msra.mxu0 %v35
    %65 = vmatpush.msra.mxu0 %v34
    %66 = vmatpush.msra.mxu0 %v33
    %67 = vmatmul.f32.gmra.mxu0 %v43
    %v68 = vpop.f32.mrf.mxu0
    %v69 = vadd.f32 %v39, %v68
    %70 = vmatmul.f32.gmra.mxu0 %v46
    %v71 = vpop.f32.mrf.mxu0
    %v72 = vadd.f32 %v39, %v71
    %73 = vmatmul.f32.gmra.mxu0 %v49
    %v74 = vpop.f32.mrf.mxu0
    %v75 = vadd.f32 %v39, %v74
    %76 = vdwg.mxu0
    %v77 = vmax.f32 %v69, 0.0
    %v78 = vmax.f32 %v72, 0.0
    %v79 = vmax.f32 %v75, 0.0
    %v80 = vld [vmem:[%s4] sm:$0xff]
    %v81 = vld [vmem:[%s4 + $0x8] sm:$0xff]
    %v82 = vld [vmem:[%s4 + $0x10] sm:$0xff]
    %v83 = vld [vmem:[%s4 + $0x18] sm:$0xff]
    %v84 = vld [vmem:[%s4 + $0x20] sm:$0xff]
    %v85 = vld [vmem:[%s4 + $0x28] sm:$0xff]
    %v86 = vld [vmem:[%s4 + $0x30] sm:$0xff]
    %v87 = vld [vmem:[%s4 + $0x38] sm:$0xff]
    %v88 = vld [vmem:[%s5] sm:$0x1]
    %v90 = vperm.slane %v88, 0
    %vm92 = vcmask 523264
    %v94 = vsel %vm92, %v77, 0
    %v97 = vsel %vm92, %v78, 0
    %v100 = vsel %vm92, %v79, 0
    %102 = vmatpush.msra.mxu0 0.0
    %103 = vmatpush.msra.mxu0 0.0
    %104 = vmatpush.msra.mxu0 0.0
    %105 = vmatpush.msra.mxu0 0.0
    %106 = vmatpush.msra.mxu0 0.0
    %107 = vmatpush.msra.mxu0 0.0
    %108 = vmatpush.msra.mxu0 0.0
    %109 = vmatpush.msra.mxu0 0.0
    %110 = vmatpush.msra.mxu0 %v87
    %111 = vmatpush.msra.mxu0 %v86
    %112 = vmatpush.msra.mxu0 %v85
    %113 = vmatpush.msra.mxu0 %v84
    %114 = vmatpush.msra.mxu0 %v83
    %115 = vmatpush.msra.mxu0 %v82
    %116 = vmatpush.msra.mxu0 %v81
    %117 = vmatpush.msra.mxu0 %v80
    %118 = vmatmul.f32.gmra.mxu0 %v94
    %v119 = vpop.f32.mrf.mxu0
    %v120 = vadd.f32 %v90, %v119
    %121 = vmatmul.f32.gmra.mxu0 %v97
    %v122 = vpop.f32.mrf.mxu0
    %v123 = vadd.f32 %v90, %v122
    %124 = vmatmul.f32.gmra.mxu0 %v100
    %v125 = vpop.f32.mrf.mxu0
    %v126 = vadd.f32 %v90, %v125
    %127 = vdwg.mxu0
    %v128 = vadd.f32 %v120, %v30
    %v129 = vadd.f32 %v123, %v31
    %v130 = vadd.f32 %v126, %v32
    %v131 = vsel %vm41, %v128, 0.0
    %132 = vadd.xlane.f32.xlu0 %v131
    %v133 = vpop.xlane.xlu0 %132
    %v134 = vsel %vm41, %v129, 0.0
    %135 = vadd.xlane.f32.xlu0 %v134
    %v136 = vpop.xlane.xlu0 %135
    %v137 = vsel %vm41, %v130, 0.0
    %138 = vadd.xlane.f32.xlu0 %v137
    %v139 = vpop.xlane.xlu0 %138
    %v140 = vrcp.pop 32.0
    %v141 = vmul.f32 32.0, %v140
    %v142 = vsub.f32 1.0, %v141
    %v143 = vmul.f32 %v140, %v142
    %v144 = vadd.f32 %v140, %v143
    %vm145 = vweird.f32 %v140
    %v146 = vsel %vm145, %v140, %v144
    %v147 = vmul.f32 %v133, %v146
    %v148 = vmul.f32 %v136, %v146
    %v149 = vmul.f32 %v139, %v146
    %v150 = vmul.f32 %v128, %v128
    %v151 = vmul.f32 %v129, %v129
    %v152 = vmul.f32 %v130, %v130
    %v153 = vsel %vm41, %v150, 0.0
    %154 = vadd.xlane.f32.xlu0 %v153
    %v155 = vpop.xlane.xlu0 %154
    %v156 = vsel %vm41, %v151, 0.0
    %157 = vadd.xlane.f32.xlu0 %v156
    %v158 = vpop.xlane.xlu0 %157
    %v159 = vsel %vm41, %v152, 0.0
    %160 = vadd.xlane.f32.xlu0 %v159
    %v161 = vpop.xlane.xlu0 %160
    %v162 = vmul.f32 %v155, %v146
    %v163 = vmul.f32 %v158, %v146
    %v164 = vmul.f32 %v161, %v146
    %v165 = vmul.f32 %v147, %v147
    %v166 = vmul.f32 %v148, %v148
    %v167 = vmul.f32 %v149, %v149
    %v168 = vsub.f32 %v162, %v165
    %v169 = vsub.f32 %v163, %v166
    %v170 = vsub.f32 %v164, %v167
    %v171 = vadd.f32 %v168, 1e-05
    %v172 = vadd.f32 %v169, 1e-05
    %v173 = vadd.f32 %v170, 1e-05
    %v174 = vrsqrt.pop %v171
    %v175 = vmul.f32 %v174, %v171
    %v176 = vmul.f32 %v175, %v174
    %v177 = vmul.f32 0.5, %v176
    %v178 = vsub.f32 1.5, %v177
    %v179 = vmul.f32 %v174, %v178
    %vm180 = vweird.f32 %v171
    %vm181 = vweird.f32 %v174
    %vm182 = vmor %vm180, %vm181
    %v183 = vsel %vm182, %v174, %v179
    %v184 = vrsqrt.pop %v172
    %v185 = vmul.f32 %v184, %v172
    %v186 = vmul.f32 %v185, %v184
    %v187 = vmul.f32 0.5, %v186
    %v188 = vsub.f32 1.5, %v187
    %v189 = vmul.f32 %v184, %v188
    %vm190 = vweird.f32 %v172
    %vm191 = vweird.f32 %v184
    %vm192 = vmor %vm190, %vm191
    %v193 = vsel %vm192, %v184, %v189
    %v194 = vrsqrt.pop %v173
    %v195 = vmul.f32 %v194, %v173
    %v196 = vmul.f32 %v195, %v194
    %v197 = vmul.f32 0.5, %v196
    %v198 = vsub.f32 1.5, %v197
    %v199 = vmul.f32 %v194, %v198
    %vm200 = vweird.f32 %v173
    %vm201 = vweird.f32 %v194
    %vm202 = vmor %vm200, %vm201
    %v203 = vsel %vm202, %v194, %v199
    %v204 = vsub.f32 %v128, %v147
    %v205 = vsub.f32 %v129, %v148
    %v206 = vsub.f32 %v130, %v149
    %v207 = vld [vmem:[%s6] sm:$0x1]
    %v209 = vperm.slane %v207, 0
    %v211 = vmul.f32 %v209, %v183
    %v212 = vmul.f32 %v209, %v193
    %v213 = vmul.f32 %v209, %v203
    %v214 = vmul.f32 %v204, %v211
    %v215 = vmul.f32 %v205, %v212
    %v216 = vmul.f32 %v206, %v213
    %v217 = vld [vmem:[%s7] sm:$0x1]
    %v219 = vperm.slane %v217, 0
    %v221 = vadd.f32 %v214, %v219
    %v222 = vadd.f32 %v215, %v219
    %v223 = vadd.f32 %v216, %v219
    %v224 = vld [vmem:[%s1] sm:$0xff]
    %v225 = vld [vmem:[%s1 + $0x8] sm:$0xff]
    %v226 = vld [vmem:[%s1 + $0x10] sm:$0xff]
    %228 = vset.pattern.permute.xlu0 0
    %229 = vperm.xlu0 %228, %v224
    %v230 = vpop.permute.xlu0 %229
    %233 = vset.pattern.permute.xlu0 0
    %234 = vperm.xlu0 %233, %v225
    %v235 = vpop.permute.xlu0 %234
    %238 = vset.pattern.permute.xlu0 0
    %239 = vperm.xlu0 %238, %v226
    %v240 = vpop.permute.xlu0 %239
    %v242 = vmul.f32 %v221, %v230
    %v243 = vmul.f32 %v222, %v235
    %v244 = vmul.f32 %v223, %v240
    %245 = vst.msk [vmem:[#allocation2] sm:$0xff] %vm41, %v242
    %246 = vst.msk [vmem:[#allocation2 + $0x8] sm:$0xff] %vm41, %v243
    %247 = vst.msk [vmem:[#allocation2 + $0x10] sm:$0xff] %vm41, %v244
    // Predicated region
    $region34: #{tpu_custom_call.1} parent=1 // pred_check
      _
    $region35: #{tpu_custom_call.1} parent=1 // pred_check_branch
      %249 = sbr.rel (0) target = $region37
    $region36: #{tpu_custom_call.1} parent=1 // pred_region
      %251 = vsyncadd [#allocation3], 0
      %s252 = sshll.u32 [#allocation2], 4
      %s253 = int_to_ptr.vmem [resolvable:$true] %s252
      %s254 = sshll.u32 %s8, 4
      %s255 = int_to_ptr.hbm [resolvable:$true] %s254
      %260 = dma.vmem_to_hbm [thread:$0]  %s253, 384, %s255, [#allocation3], 128, 128, 8
    $region37: #{tpu_custom_call.1} parent=1 // pred_fallthru
      _
    // Predicated region
    $region38: #{tpu_custom_call.1} parent=1 // pred_check
      _
    $region39: #{tpu_custom_call.1} parent=1 // pred_check_branch
      %262 = sbr.rel (0) target = $region41
    $region40: #{tpu_custom_call.1} parent=1 // pred_region
      %264 = dma.done [#allocation3], 384
    $region41: #{tpu_custom_call.1} parent=1 // pred_fallthru
      _
    %265 = vsyncpa [#allocation3], 1

</llo_original>
